<compile_context>
chip_gen: v6e
topology: v6e:2x2x1
jax: 0.10.0
libtpu: 0.0.40
codegen_flags: <defaults>
</compile_context>

<pallas_src>
import functools

import jax
import jax.numpy as jnp
from jax.experimental import pallas as pl
from jax.experimental.pallas import tpu as pltpu

_OUT_PAD = 128  # lane-dense output width


def _round_up(x, m):
    return (x + m - 1) // m * m


def _actor_critic_kernel(na, x_ref, w_ref, b_ref, out_ref):
    """One batch tile: fused (policy|critic) matmul + masked softmax.

    x_ref:   (TILE_B, D)      f32
    w_ref:   (D, 128)         f32, cols [0:na]=policy, [na]=critic, rest zero
    b_ref:   (1, 128)         f32, same column layout
    out_ref: (TILE_B, 128)    f32, cols [0:na]=softmax probs, [na]=V
    """
    x = x_ref[...]
    # Single fused MXU matmul + bias.
    logits = jnp.dot(x, w_ref[...], preferred_element_type=jnp.float32) + b_ref[...]

    # Softmax restricted to the first `na` lanes (policy logits).
    col = jax.lax.broadcasted_iota(jnp.int32, logits.shape, 1)
    is_policy = col < na
    masked = jnp.where(is_policy, logits, -jnp.inf)
    m = jnp.max(masked, axis=-1, keepdims=True)
    e = jnp.where(is_policy, jnp.exp(masked - m), 0.0)
    denom = jnp.sum(e, axis=-1, keepdims=True)
    probs = e / denom

    # Lane-dense combined store: softmax probs in policy lanes, raw linear
    # output (the critic value / zero-padded lanes) everywhere else.
    out_ref[...] = jnp.where(is_policy, probs, logits)


def linear_actor_critic(x_flat, w_fused, b_fused, na, *, max_tile_b=1024):
    """x_flat:  (B, D) f32
       w_fused: (D, na+1) f32  -- [:, :na] policy weights, [:, na] critic weight
       b_fused: (1, na+1) f32
       Returns (pa (B, na), V (B,))."""
    B, D = x_flat.shape
    out_cols = w_fused.shape[1]  # na + 1

    # Pad weight/bias columns to a full 128-lane output (zero columns).
    w_pad = jnp.zeros((D, _OUT_PAD), jnp.float32).at[:, :out_cols].set(w_fused)
    b_pad = jnp.zeros((1, _OUT_PAD), jnp.float32).at[:, :out_cols].set(b_fused)

    # Batch tiling: sublane-aligned (multiple of 8), capped at max_tile_b.
    tile_b = min(max_tile_b, _round_up(B, 8))
    b_padded = _round_up(B, tile_b)
    if b_padded != B:
        x_flat = jnp.pad(x_flat, ((0, b_padded - B), (0, 0)))

    grid = (b_padded // tile_b,)

    out = pl.pallas_call(
        functools.partial(_actor_critic_kernel, na),
        out_shape=jax.ShapeDtypeStruct((b_padded, _OUT_PAD), jnp.float32),
        grid_spec=pltpu.PrefetchScalarGridSpec(
            num_scalar_prefetch=0,
            grid=grid,
            in_specs=[
                # x: one batch tile per grid step (double-buffered DMA).
                pl.BlockSpec((tile_b, D), lambda i: (i, 0)),
                # weights / bias: constant index_map -> VMEM resident.
                pl.BlockSpec((D, _OUT_PAD), lambda i: (0, 0)),
                pl.BlockSpec((1, _OUT_PAD), lambda i: (0, 0)),
            ],
            out_specs=pl.BlockSpec((tile_b, _OUT_PAD), lambda i: (i, 0)),
        ),
        compiler_params=pltpu.CompilerParams(
            dimension_semantics=("parallel",),
        ),
    )(x_flat, w_pad, b_pad)

    pa = out[:B, :na]
    v = out[:B, na]
    return pa, v


class LinearActorCriticPallas:
    def __init__(self, H_in=16, nc=2, na=4, key=jax.random.PRNGKey(0)):
        self.H_in = H_in
        self.nc = nc
        self.na = na
        D = nc * H_in * H_in
        k1, k2, k3, k4 = jax.random.split(key, 4)
        bound = 1.0 / jnp.sqrt(jnp.float32(D))  # torch nn.Linear default init range
        # Stored (D, out) == transpose of torch's (out, D) layout.
        self.w_policy = jax.random.uniform(k1, (D, na), jnp.float32, -bound, bound)
        self.b_policy = jax.random.uniform(k2, (1, na), jnp.float32, -bound, bound)
        self.w_critic = jax.random.uniform(k3, (D, 1), jnp.float32, -bound, bound)
        self.b_critic = jax.random.uniform(k4, (1, 1), jnp.float32, -bound, bound)
        # Fused head: single (D, na+1) weight / (1, na+1) bias.
        self.w_fused = jnp.concatenate([self.w_policy, self.w_critic], axis=1)
        self.b_fused = jnp.concatenate([self.b_policy, self.b_critic], axis=1)

    def __call__(self, x):
        # x: (B, nc, H, H) NCHW -> flatten to (B, nc*H*H), same as torch .view
        B = x.shape[0]
        x_flat = x.reshape(B, self.nc * self.H_in * self.H_in).astype(jnp.float32)
        return linear_actor_critic(x_flat, self.w_fused, self.b_fused, self.na)


if __name__ == "__main__":
    key = jax.random.PRNGKey(0)
    k_in, k_param = jax.random.split(key)

    B, nc, H = 2, 2, 16
    x = jax.random.normal(k_in, (B, nc, H, H), jnp.float32)

    model = LinearActorCriticPallas(H_in=H, nc=nc, na=4, key=k_param)
    pa, V = model(x)
    pa, V = jax.block_until_ready((pa, V))

    # Reference check against plain JAX (unfused heads).
    x_flat = x.reshape(B, nc * H * H)
    logits_ref = x_flat @ model.w_policy + model.b_policy
    pa_ref = jax.nn.softmax(logits_ref, axis=-1)
    v_ref = (x_flat @ model.w_critic + model.b_critic).reshape(-1)

    assert pa.shape == (B, 4) and V.shape == (B,)
    assert jnp.allclose(pa, pa_ref, atol=1e-5, rtol=1e-5)
    assert jnp.allclose(V, v_ref, atol=1e-5, rtol=1e-5)

    print("KERNEL_OK")
</pallas_src>

<mosaic_0001>
module attributes {stable_mosaic.version = 11 : i64} {
  func.func @_actor_critic_kernel(%arg0: i32, %arg1: memref<8x512xf32, #tpu.memory_space<vmem>>, %arg2: memref<512x128xf32, #tpu.memory_space<vmem>>, %arg3: memref<1x128xf32, #tpu.memory_space<vmem>>, %arg4: memref<8x128xf32, #tpu.memory_space<vmem>>) attributes {dimension_semantics = [#tpu.dimension_semantics<parallel>], iteration_bounds = array<i64: 1>, scalar_prefetch = 0 : i64, scratch_operands = 0 : i64, tpu.core_type = #tpu.core_type<tc>, window_params = [{transform_indices = @transform_0, window_bounds = array<i64: 8, 512>}, {pipeline_mode = #tpu.pipeline_mode<synchronous>, transform_indices = @transform_1, window_bounds = array<i64: 512, 128>}, {pipeline_mode = #tpu.pipeline_mode<synchronous>, transform_indices = @transform_2, window_bounds = array<i64: 1, 128>}, {transform_indices = @transform_3, window_bounds = array<i64: 8, 128>}]} {
    %c0 = arith.constant 0 : index
    %c0_0 = arith.constant 0 : index
    %0 = vector.load %arg1[%c0, %c0_0] : memref<8x512xf32, #tpu.memory_space<vmem>>, vector<8x512xf32>
    %c0_1 = arith.constant 0 : index
    %c0_2 = arith.constant 0 : index
    %1 = vector.load %arg2[%c0_1, %c0_2] : memref<512x128xf32, #tpu.memory_space<vmem>>, vector<512x128xf32>
    %cst = arith.constant dense<0.000000e+00> : vector<8x128xf32>
    %2 = tpu.matmul %0, %1, %cst {dimension_numbers = #tpu.dot_dimension_numbers<[1], [0], [0], [1], [0, 0, 1, 1], [], []>} : vector<8x512xf32>, vector<512x128xf32>, vector<8x128xf32> -> vector<8x128xf32>
    %c0_3 = arith.constant 0 : index
    %c0_4 = arith.constant 0 : index
    %3 = vector.load %arg3[%c0_3, %c0_4] : memref<1x128xf32, #tpu.memory_space<vmem>>, vector<1x128xf32>
    %4 = vector.broadcast %3 : vector<1x128xf32> to vector<8x128xf32>
    %5 = arith.addf %2, %4 : vector<8x128xf32>
    %6 = tpu.iota {dimensions = array<i32: 1>} : vector<8x128xi32>
    %c4_i32 = arith.constant 4 : i32
    %7 = vector.broadcast %c4_i32 : i32 to vector<8x128xi32>
    %8 = arith.cmpi slt, %6, %7 : vector<8x128xi32>
    %cst_5 = arith.constant 0xFF800000 : f32
    %9 = vector.broadcast %cst_5 : f32 to vector<8x128xf32>
    %10 = arith.select %8, %5, %9 : vector<8x128xi1>, vector<8x128xf32>
    %cst_6 = arith.constant dense<0xFF800000> : vector<8xf32>
    %11 = vector.multi_reduction <maximumf>, %10, %cst_6 [1] : vector<8x128xf32> to vector<8xf32>
    %12 = vector.shape_cast %11 : vector<8xf32> to vector<8x1xf32>
    %13 = vector.broadcast %12 : vector<8x1xf32> to vector<8x128xf32>
    %14 = arith.subf %10, %13 : vector<8x128xf32>
    %15 = math.exp %14 : vector<8x128xf32>
    %cst_7 = arith.constant 0.000000e+00 : f32
    %16 = vector.broadcast %cst_7 : f32 to vector<8x128xf32>
    %17 = arith.select %8, %15, %16 : vector<8x128xi1>, vector<8x128xf32>
    %cst_8 = arith.constant dense<0.000000e+00> : vector<8xf32>
    %18 = vector.multi_reduction <add>, %17, %cst_8 [1] : vector<8x128xf32> to vector<8xf32>
    %19 = vector.shape_cast %18 : vector<8xf32> to vector<8x1xf32>
    %20 = vector.broadcast %19 : vector<8x1xf32> to vector<8x128xf32>
    %21 = arith.divf %17, %20 : vector<8x128xf32>
    %22 = arith.select %8, %21, %5 : vector<8x128xi1>, vector<8x128xf32>
    %c0_9 = arith.constant 0 : index
    %c0_10 = arith.constant 0 : index
    %23 = vector.load %arg4[%c0_9, %c0_10] : memref<8x128xf32, #tpu.memory_space<vmem>>, vector<8x128xf32>
    tpu.vector_store %arg4[%c0_9, %c0_10], %22 {strides = array<i32>} : memref<8x128xf32, #tpu.memory_space<vmem>>, vector<8x128xf32>,
    return
  }
  func.func @transform_0(%arg0: i32) -> (i32, i32) {
    %c0_i32 = arith.constant 0 : i32
    %c0_i32_0 = arith.constant 0 : i32
    return %arg0, %c0_i32 : i32, i32
  }
  func.func @transform_1(%arg0: i32) -> (i32, i32) {
    %c0_i32 = arith.constant 0 : i32
    %c0_i32_0 = arith.constant 0 : i32
    %c0_i32_1 = arith.constant 0 : i32
    return %c0_i32, %c0_i32_0 : i32, i32
  }
  func.func @transform_2(%arg0: i32) -> (i32, i32) {
    %c0_i32 = arith.constant 0 : i32
    %c0_i32_0 = arith.constant 0 : i32
    %c0_i32_1 = arith.constant 0 : i32
    return %c0_i32, %c0_i32_0 : i32, i32
  }
  func.func @transform_3(%arg0: i32) -> (i32, i32) {
    %c0_i32 = arith.constant 0 : i32
    %c0_i32_0 = arith.constant 0 : i32
    return %arg0, %c0_i32 : i32, i32
  }
}

</mosaic_0001>

<llo_original>
// kernel: tpu_custom_call.1
$region0: #{tpu_custom_call.1}
  #allocation0 [shape = 'u32[]', space=smem, size = 0x4, offset = 0x4, fixed_abs, tag = 'smem constant byte address 0x4 - core index']
  #allocation1 [shape = 'u32[144,128]{1,0:T(1,128)}', space=vmem, size = 0x12000, scoped, tag = 'internal scratch']
  %s0 = inlined_call_operand.hbm [shape: f32[8,512], index: 0, kind: input, shape index: {}]
  %s1 = inlined_call_operand.hbm [shape: f32[512,128], index: 1, kind: input, shape index: {}]
  %s2 = inlined_call_operand.vmem [shape: f32[1,128], index: 2, kind: input, shape index: {}]
  %s3 = inlined_call_operand.hbm [shape: f32[8,128], index: 3, kind: output, shape index: {}]
  %s4 = sld [smem:[#allocation0]]
  $region30: #{tpu_custom_call.1} parent=0
    _
  %s6 = ssub.s32 1, %s4
  %s7 = scalar_select 0, %s6, %s4
  $region1: #{tpu_custom_call.1} parent=0
    #allocation2 [shape = 'u8[16384]{0}', space=vmem, size = 0x4000, scoped, tag = 'input window, operand 0, single buffered']
    #allocation3 [shape = 's32[1]{0}', space=sflag, size = 0x4, scoped, tag = 'scoped memory for tpu_custom_call.1']
    #allocation4 [shape = 's32[1]{0}', space=sflag, size = 0x4, scoped, tag = 'scoped memory for tpu_custom_call.1']
    #allocation5 [shape = 'u8[262144]{0}', space=vmem, size = 0x40000, scoped, tag = 'input window, operand 1, single buffered']
    #allocation6 [shape = 's32[1]{0}', space=sflag, size = 0x4, scoped, tag = 'scoped memory for tpu_custom_call.1']
    #allocation7 [shape = 'u8[4096]{0}', space=vmem, size = 0x1000, scoped, tag = 'output window, operand 0, single buffered']
    %8 = vsyncpa [#allocation3], 0
    %9 = vsyncpa [#allocation6], 0
    %10 = vsyncpa [#allocation4], 0
    // Predicated region
    $region2: #{tpu_custom_call.1} parent=1 // pred_check
      _
    $region3: #{tpu_custom_call.1} parent=1 // pred_check_branch
      %12 = sbr.rel (0) target = $region5
    $region4: #{tpu_custom_call.1} parent=1 // pred_region
      %s14 = ssub.s32 512, 512
      %15 = vsyncadd [#allocation3], %s14
      %s17 = sshll.u32 [#allocation2], 4
      %s18 = int_to_ptr.vmem [resolvable:$true] %s17
      %20 = dma.hbm_to_vmem [thread:$0]  %s0, 512, %s18, [#allocation3]
    $region5: #{tpu_custom_call.1} parent=1 // pred_fallthru
      _
    // Predicated region
    $region6: #{tpu_custom_call.1} parent=1 // pred_check
      _
    $region7: #{tpu_custom_call.1} parent=1 // pred_check_branch
      %22 = sbr.rel (0) target = $region9
    $region8: #{tpu_custom_call.1} parent=1 // pred_region
      %s24 = ssub.s32 8192, 8192
      %25 = vsyncadd [#allocation6], %s24
      %s26 = sshll.u32 [#allocation5], 4
      %s27 = int_to_ptr.vmem [resolvable:$true] %s26
      %32 = dma.hbm_to_vmem [thread:$0]  %s1, 8192, %s27, [#allocation6], 128, 128, 8
    $region9: #{tpu_custom_call.1} parent=1 // pred_fallthru
      _
    // Predicated region
    $region10: #{tpu_custom_call.1} parent=1 // pred_check
      _
    $region11: #{tpu_custom_call.1} parent=1 // pred_check_branch
      %34 = sbr.rel (0) target = $region13
    $region12: #{tpu_custom_call.1} parent=1 // pred_region
      _
    $region13: #{tpu_custom_call.1} parent=1 // pred_fallthru
      _
    // Predicated region
    $region14: #{tpu_custom_call.1} parent=1 // pred_check
      _
    $region15: #{tpu_custom_call.1} parent=1 // pred_check_branch
      %36 = sbr.rel (0) target = $region17
    $region16: #{tpu_custom_call.1} parent=1 // pred_region
      %37 = dma.done [#allocation3], 512
    $region17: #{tpu_custom_call.1} parent=1 // pred_fallthru
      _
    // Predicated region
    $region18: #{tpu_custom_call.1} parent=1 // pred_check
      _
    $region19: #{tpu_custom_call.1} parent=1 // pred_check_branch
      %39 = sbr.rel (0) target = $region21
    $region20: #{tpu_custom_call.1} parent=1 // pred_region
      %40 = dma.done [#allocation6], 8192
    $region21: #{tpu_custom_call.1} parent=1 // pred_fallthru
      _
    %v41 = vld [vmem:[#allocation2] sm:$0xff]
    %v42 = vld [vmem:[#allocation2 + $0x8] sm:$0xff]
    %v43 = vld [vmem:[#allocation2 + $0x10] sm:$0xff]
    %v44 = vld [vmem:[#allocation2 + $0x18] sm:$0xff]
    %v45 = vld [vmem:[#allocation5] sm:$0xff]
    %v46 = vld [vmem:[#allocation5 + $0x8] sm:$0xff]
    %v47 = vld [vmem:[#allocation5 + $0x10] sm:$0xff]
    %v48 = vld [vmem:[#allocation5 + $0x18] sm:$0xff]
    %v49 = vld [vmem:[#allocation5 + $0x20] sm:$0xff]
    %v50 = vld [vmem:[#allocation5 + $0x28] sm:$0xff]
    %v51 = vld [vmem:[#allocation5 + $0x30] sm:$0xff]
    %v52 = vld [vmem:[#allocation5 + $0x38] sm:$0xff]
    %v53 = vld [vmem:[#allocation5 + $0x40] sm:$0xff]
    %v54 = vld [vmem:[#allocation5 + $0x48] sm:$0xff]
    %v55 = vld [vmem:[#allocation5 + $0x50] sm:$0xff]
    %v56 = vld [vmem:[#allocation5 + $0x58] sm:$0xff]
    %v57 = vld [vmem:[#allocation5 + $0x60] sm:$0xff]
    %v58 = vld [vmem:[#allocation5 + $0x68] sm:$0xff]
    %v59 = vld [vmem:[#allocation5 + $0x70] sm:$0xff]
    %v60 = vld [vmem:[#allocation5 + $0x78] sm:$0xff]
    %v61 = vld [vmem:[#allocation5 + $0x80] sm:$0xff]
    %v62 = vld [vmem:[#allocation5 + $0x88] sm:$0xff]
    %v63 = vld [vmem:[#allocation5 + $0x90] sm:$0xff]
    %v64 = vld [vmem:[#allocation5 + $0x98] sm:$0xff]
    %v65 = vld [vmem:[#allocation5 + $0xa0] sm:$0xff]
    %v66 = vld [vmem:[#allocation5 + $0xa8] sm:$0xff]
    %v67 = vld [vmem:[#allocation5 + $0xb0] sm:$0xff]
    %v68 = vld [vmem:[#allocation5 + $0xb8] sm:$0xff]
    %v69 = vld [vmem:[#allocation5 + $0xc0] sm:$0xff]
    %v70 = vld [vmem:[#allocation5 + $0xc8] sm:$0xff]
    %v71 = vld [vmem:[#allocation5 + $0xd0] sm:$0xff]
    %v72 = vld [vmem:[#allocation5 + $0xd8] sm:$0xff]
    %v73 = vld [vmem:[#allocation5 + $0xe0] sm:$0xff]
    %v74 = vld [vmem:[#allocation5 + $0xe8] sm:$0xff]
    %v75 = vld [vmem:[#allocation5 + $0xf0] sm:$0xff]
    %v76 = vld [vmem:[#allocation5 + $0xf8] sm:$0xff]
    %v77 = vld [vmem:[#allocation5 + $0x100] sm:$0xff]
    %v78 = vld [vmem:[#allocation5 + $0x108] sm:$0xff]
    %v79 = vld [vmem:[#allocation5 + $0x110] sm:$0xff]
    %v80 = vld [vmem:[#allocation5 + $0x118] sm:$0xff]
    %v81 = vld [vmem:[#allocation5 + $0x120] sm:$0xff]
    %v82 = vld [vmem:[#allocation5 + $0x128] sm:$0xff]
    %v83 = vld [vmem:[#allocation5 + $0x130] sm:$0xff]
    %v84 = vld [vmem:[#allocation5 + $0x138] sm:$0xff]
    %v85 = vld [vmem:[#allocation5 + $0x140] sm:$0xff]
    %v86 = vld [vmem:[#allocation5 + $0x148] sm:$0xff]
    %v87 = vld [vmem:[#allocation5 + $0x150] sm:$0xff]
    %v88 = vld [vmem:[#allocation5 + $0x158] sm:$0xff]
    %v89 = vld [vmem:[#allocation5 + $0x160] sm:$0xff]
    %v90 = vld [vmem:[#allocation5 + $0x168] sm:$0xff]
    %v91 = vld [vmem:[#allocation5 + $0x170] sm:$0xff]
    %v92 = vld [vmem:[#allocation5 + $0x178] sm:$0xff]
    %v93 = vld [vmem:[#allocation5 + $0x180] sm:$0xff]
    %v94 = vld [vmem:[#allocation5 + $0x188] sm:$0xff]
    %v95 = vld [vmem:[#allocation5 + $0x190] sm:$0xff]
    %v96 = vld [vmem:[#allocation5 + $0x198] sm:$0xff]
    %v97 = vld [vmem:[#allocation5 + $0x1a0] sm:$0xff]
    %v98 = vld [vmem:[#allocation5 + $0x1a8] sm:$0xff]
    %v99 = vld [vmem:[#allocation5 + $0x1b0] sm:$0xff]
    %v100 = vld [vmem:[#allocation5 + $0x1b8] sm:$0xff]
    %v101 = vld [vmem:[#allocation5 + $0x1c0] sm:$0xff]
    %v102 = vld [vmem:[#allocation5 + $0x1c8] sm:$0xff]
    %v103 = vld [vmem:[#allocation5 + $0x1d0] sm:$0xff]
    %v104 = vld [vmem:[#allocation5 + $0x1d8] sm:$0xff]
    %v105 = vld [vmem:[#allocation5 + $0x1e0] sm:$0xff]
    %v106 = vld [vmem:[#allocation5 + $0x1e8] sm:$0xff]
    %v107 = vld [vmem:[#allocation5 + $0x1f0] sm:$0xff]
    %v108 = vld [vmem:[#allocation5 + $0x1f8] sm:$0xff]
    %v109 = vld [vmem:[%s2] sm:$0x1]
    %v111 = vlaneseq
    %v112 = vshrl.u32 %v111, 7
    %v113 = vsub.s32 0, %v112
    %v114 = vrot.slane %v109, %v113
    %116 = vmatprep.subr.mxu0 0.0
    %117 = vmatpush1.msra.mxu0 %v60
    %118 = vmatprep.subr.mxu0 0.0
    %119 = vmatpush1.msra.mxu0 %v59
    %120 = vmatprep.subr.mxu0 0.0
    %121 = vmatpush1.msra.mxu0 %v58
    %122 = vmatprep.subr.mxu0 0.0
    %123 = vmatpush1.msra.mxu0 %v57
    %124 = vmatprep.subr.mxu0 0.0
    %125 = vmatpush1.msra.mxu0 %v56
    %126 = vmatprep.subr.mxu0 0.0
    %127 = vmatpush1.msra.mxu0 %v55
    %128 = vmatprep.subr.mxu0 0.0
    %129 = vmatpush1.msra.mxu0 %v54
    %130 = vmatprep.subr.mxu0 0.0
    %131 = vmatpush1.msra.mxu0 %v53
    %132 = vmatprep.subr.mxu0 0.0
    %133 = vmatpush1.msra.mxu0 %v52
    %134 = vmatprep.subr.mxu0 0.0
    %135 = vmatpush1.msra.mxu0 %v51
    %136 = vmatprep.subr.mxu0 0.0
    %137 = vmatpush1.msra.mxu0 %v50
    %138 = vmatprep.subr.mxu0 0.0
    %139 = vmatpush1.msra.mxu0 %v49
    %140 = vmatprep.subr.mxu0 0.0
    %141 = vmatpush1.msra.mxu0 %v48
    %142 = vmatprep.subr.mxu0 0.0
    %143 = vmatpush1.msra.mxu0 %v47
    %144 = vmatprep.subr.mxu0 0.0
    %145 = vmatpush1.msra.mxu0 %v46
    %146 = vmatprep.subr.mxu0 0.0
    %147 = vmatpush1.msra.mxu0 %v45
    %148 = vmatprep.subr.mxu0 0.0
    %149 = vmatpush2.msra.mxu0 %v76
    %150 = vmatprep.subr.mxu0 0.0
    %151 = vmatpush2.msra.mxu0 %v75
    %152 = vmatprep.subr.mxu0 0.0
    %153 = vmatpush2.msra.mxu0 %v74
    %154 = vmatprep.subr.mxu0 0.0
    %155 = vmatpush2.msra.mxu0 %v73
    %156 = vmatprep.subr.mxu0 0.0
    %157 = vmatpush2.msra.mxu0 %v72
    %158 = vmatprep.subr.mxu0 0.0
    %159 = vmatpush2.msra.mxu0 %v71
    %160 = vmatprep.subr.mxu0 0.0
    %161 = vmatpush2.msra.mxu0 %v70
    %162 = vmatprep.subr.mxu0 0.0
    %163 = vmatpush2.msra.mxu0 %v69
    %164 = vmatprep.subr.mxu0 0.0
    %165 = vmatpush2.msra.mxu0 %v68
    %166 = vmatprep.subr.mxu0 0.0
    %167 = vmatpush2.msra.mxu0 %v67
    %168 = vmatprep.subr.mxu0 0.0
    %169 = vmatpush2.msra.mxu0 %v66
    %170 = vmatprep.subr.mxu0 0.0
    %171 = vmatpush2.msra.mxu0 %v65
    %172 = vmatprep.subr.mxu0 0.0
    %173 = vmatpush2.msra.mxu0 %v64
    %174 = vmatprep.subr.mxu0 0.0
    %175 = vmatpush2.msra.mxu0 %v63
    %176 = vmatprep.subr.mxu0 0.0
    %177 = vmatpush2.msra.mxu0 %v62
    %178 = vmatprep.subr.mxu0 0.0
    %179 = vmatpush2.msra.mxu0 %v61
    %180 = vmatprep.mubr.f32.mxu0 %v42
    %181 = vmatmul.mubr.f32.gmra.mxu0 %v41
    %v182 = vpop.f32.mrf.mxu0
    %v183 = vadd.f32 %v114, %v182
    %v184 = vpop.f32.mrf.mxu0
    %185 = vdwg.mxu0
    %186 = vmatprep.subr.mxu0 0.0
    %187 = vmatpush1.msra.mxu0 %v92
    %188 = vmatprep.subr.mxu0 0.0
    %189 = vmatpush1.msra.mxu0 %v91
    %190 = vmatprep.subr.mxu0 0.0
    %191 = vmatpush1.msra.mxu0 %v90
    %192 = vmatprep.subr.mxu0 0.0
    %193 = vmatpush1.msra.mxu0 %v89
    %194 = vmatprep.subr.mxu0 0.0
    %195 = vmatpush1.msra.mxu0 %v88
    %196 = vmatprep.subr.mxu0 0.0
    %197 = vmatpush1.msra.mxu0 %v87
    %198 = vmatprep.subr.mxu0 0.0
    %199 = vmatpush1.msra.mxu0 %v86
    %200 = vmatprep.subr.mxu0 0.0
    %201 = vmatpush1.msra.mxu0 %v85
    %202 = vmatprep.subr.mxu0 0.0
    %203 = vmatpush1.msra.mxu0 %v84
    %204 = vmatprep.subr.mxu0 0.0
    %205 = vmatpush1.msra.mxu0 %v83
    %206 = vmatprep.subr.mxu0 0.0
    %207 = vmatpush1.msra.mxu0 %v82
    %208 = vmatprep.subr.mxu0 0.0
    %209 = vmatpush1.msra.mxu0 %v81
    %210 = vmatprep.subr.mxu0 0.0
    %211 = vmatpush1.msra.mxu0 %v80
    %212 = vmatprep.subr.mxu0 0.0
    %213 = vmatpush1.msra.mxu0 %v79
    %214 = vmatprep.subr.mxu0 0.0
    %215 = vmatpush1.msra.mxu0 %v78
    %216 = vmatprep.subr.mxu0 0.0
    %217 = vmatpush1.msra.mxu0 %v77
    %218 = vmatprep.subr.mxu0 0.0
    %219 = vmatpush2.msra.mxu0 %v108
    %220 = vmatprep.subr.mxu0 0.0
    %221 = vmatpush2.msra.mxu0 %v107
    %222 = vmatprep.subr.mxu0 0.0
    %223 = vmatpush2.msra.mxu0 %v106
    %224 = vmatprep.subr.mxu0 0.0
    %225 = vmatpush2.msra.mxu0 %v105
    %226 = vmatprep.subr.mxu0 0.0
    %227 = vmatpush2.msra.mxu0 %v104
    %228 = vmatprep.subr.mxu0 0.0
    %229 = vmatpush2.msra.mxu0 %v103
    %230 = vmatprep.subr.mxu0 0.0
    %231 = vmatpush2.msra.mxu0 %v102
    %232 = vmatprep.subr.mxu0 0.0
    %233 = vmatpush2.msra.mxu0 %v101
    %234 = vmatprep.subr.mxu0 0.0
    %235 = vmatpush2.msra.mxu0 %v100
    %236 = vmatprep.subr.mxu0 0.0
    %237 = vmatpush2.msra.mxu0 %v99
    %238 = vmatprep.subr.mxu0 0.0
    %239 = vmatpush2.msra.mxu0 %v98
    %240 = vmatprep.subr.mxu0 0.0
    %241 = vmatpush2.msra.mxu0 %v97
    %242 = vmatprep.subr.mxu0 0.0
    %243 = vmatpush2.msra.mxu0 %v96
    %244 = vmatprep.subr.mxu0 0.0
    %245 = vmatpush2.msra.mxu0 %v95
    %246 = vmatprep.subr.mxu0 0.0
    %247 = vmatpush2.msra.mxu0 %v94
    %248 = vmatprep.subr.mxu0 0.0
    %249 = vmatpush2.msra.mxu0 %v93
    %250 = vmatprep.mubr.f32.mxu0 %v44
    %251 = vmatmul.mubr.f32.gmra.mxu0 %v43
    %v252 = vpop.f32.mrf.mxu0
    %v253 = vadd.f32 %v183, %v252
    %v254 = vpop.f32.mrf.mxu0
    %255 = vdwg.mxu0
    %v256 = vlaneseq
    %v257 = vand.u32 %v256, 127
    %vm258 = vcmp.lt.s32.totalorder %v257, 4
    %v259 = vsel %vm258, %v253, -inf
    %260 = vmax.xlane.f32.xlu0 %v259
    %v261 = vpop.xlane.xlu0 %260
    %v262 = vsub.f32 %v259, %v261
    %v263 = vmul.f32 %v262, 1.442695
    %v264 = vpow.pop %v263
    %v265 = vsel %vm258, %v264, 0.0
    %266 = vadd.xlane.f32.xlu0 %v265
    %v267 = vpop.xlane.xlu0 %266
    %v268 = vrcp.pop %v267
    %v269 = vmul.f32 %v265, %v268
    %v270 = vsel %vm258, %v269, %v253
    %271 = vst [vmem:[#allocation7] sm:$0xff] %v270
    // Predicated region
    $region22: #{tpu_custom_call.1} parent=1 // pred_check
      _
    $region23: #{tpu_custom_call.1} parent=1 // pred_check_branch
      %273 = sbr.rel (0) target = $region25
    $region24: #{tpu_custom_call.1} parent=1 // pred_region
      %s275 = ssub.s32 128, 128
      %276 = vsyncadd [#allocation4], %s275
      %s278 = sshll.u32 [#allocation7], 4
      %s279 = int_to_ptr.vmem [resolvable:$true] %s278
      %281 = dma.vmem_to_hbm [thread:$0]  %s279, 128, %s3, [#allocation4]
    $region25: #{tpu_custom_call.1} parent=1 // pred_fallthru
      _
    // Predicated region
    $region26: #{tpu_custom_call.1} parent=1 // pred_check
      _
    $region27: #{tpu_custom_call.1} parent=1 // pred_check_branch
      %283 = sbr.rel (0) target = $region29
    $region28: #{tpu_custom_call.1} parent=1 // pred_region
      %284 = dma.done [#allocation4], 128
    $region29: #{tpu_custom_call.1} parent=1 // pred_fallthru
      _
    %285 = vsyncpa [#allocation3], 1
    %286 = vsyncpa [#allocation6], 1
    %287 = vsyncpa [#allocation4], 1

</llo_original>
